<compile_context>
chip_gen: v7x
topology: tpu7x:2x2x1
jax: 0.10.0
libtpu: 0.0.40
codegen_flags: <defaults>
</compile_context>

<pallas_src>
import functools

import jax
import jax.numpy as jnp
from jax.experimental import pallas as pl
from jax.experimental.pallas import tpu as pltpu

_EPS = 1e-5


def _round_up(a, b):
    return ((a + b - 1) // b) * b


def _ln_kernel_folded(x_ref, w_ref, r_ref, b_ref, o_ref, *, eps, x_is_bf16):
    """Lane-folded path: each (tr, 128) row holds g independent C-channel groups.

    r_ref: (L, g) bf16 matrix with entries 1/C (exact: C | 128 => power of two).
           x @ r gives the per-group MEAN directly on a narrow (tr, g) tensor.
    b_ref: (g, L) bf16 0/1 matrix broadcasting the narrow per-group rsqrt back to
           the full 128-lane width (exact lane copy via hi/lo split).
    """
    x = x_ref[...].astype(jnp.float32)          # (tr, L)
    r = r_ref[...]                              # (L, g) bf16
    b = b_ref[...]                              # (g, L) bf16

    def seg_mean_hi_lo(v):                      # exact-enough f32 mean via bf16 MXU
        v_hi = v.astype(jnp.bfloat16)
        v_lo = (v - v_hi.astype(jnp.float32)).astype(jnp.bfloat16)
        return (jnp.dot(v_hi, r, preferred_element_type=jnp.float32)
                + jnp.dot(v_lo, r, preferred_element_type=jnp.float32))

    if x_is_bf16:
        # bf16 input: the hi pass is already exact; skip the lo matmul + casts.
        mu = jnp.dot(x_ref[...], r, preferred_element_type=jnp.float32)   # (tr, g)
    else:
        mu = seg_mean_hi_lo(x)                                            # (tr, g)
    ex2 = seg_mean_hi_lo(x * x)                                           # (tr, g)

    var = jnp.maximum(ex2 - mu * mu, 0.0)       # single-pass biased variance
    inv = jax.lax.rsqrt(var + eps)              # (tr, g): narrow EUP work

    # Broadcast the narrow rsqrt back to (tr, L) with an exact 0/1 hi/lo matmul.
    inv_hi = inv.astype(jnp.bfloat16)
    inv_lo = (inv - inv_hi.astype(jnp.float32)).astype(jnp.bfloat16)
    inv_full = (jnp.dot(inv_hi, b, preferred_element_type=jnp.float32)
                + jnp.dot(inv_lo, b, preferred_element_type=jnp.float32))  # (tr, L)

    w = w_ref[...].astype(jnp.float32)          # (1, L) = weight tiled g times
    o_ref[...] = (x * inv_full * w).astype(o_ref.dtype)


def _ln_kernel_plain(x_ref, w_ref, o_ref, *, eps, inv_c):
    """Plain path (C a multiple of 128, or C that does not divide 128)."""
    x = x_ref[...].astype(jnp.float32)          # (tr, C)
    mu = jnp.sum(x, axis=-1, keepdims=True) * inv_c
    ex2 = jnp.sum(x * x, axis=-1, keepdims=True) * inv_c
    var = jnp.maximum(ex2 - mu * mu, 0.0)
    inv = jax.lax.rsqrt(var + eps)
    w = w_ref[...].astype(jnp.float32)
    o_ref[...] = (x * inv * w).astype(o_ref.dtype)


def biasfree_layernorm(x, weight, *, block_bytes=2 << 20, small_bytes=1 << 20):
    """BiasFree LayerNorm over the last dim. x: (..., C); weight: (C,)."""
    C = x.shape[-1]
    assert weight.shape == (C,)
    orig_shape = x.shape
    x2 = x.reshape(-1, C)
    rows = x2.shape[0]
    itemsize = jnp.dtype(x.dtype).itemsize

    # Lane-dense folding: pack g channel-groups side by side so the lane axis is a
    # full 128 wide (unmasked vst) whenever C divides 128.
    if C < 128 and 128 % C == 0:
        g = 128 // C
    else:
        g = 1
        # TODO(synk): C < 128 that does not divide 128 (e.g. 48, 96) falls back to
        # the plain path with masked sub-128-lane stores; extend the folding with
        # per-group lane padding if such channel counts become hot.
    L = g * C

    # Pad rows only to a multiple of g (needed for a contiguous fold) and only when
    # required.  No padding to a block multiple: the last grid block is ragged.
    pad_rows = (-rows) % g
    if pad_rows:
        x2 = jnp.pad(x2, ((0, pad_rows), (0, 0)))
    rows_g = rows + pad_rows
    fr = rows_g // g
    x_folded = x2.reshape(fr, L)                # contiguous reshape: free

    x_is_bf16 = jnp.dtype(x.dtype) == jnp.dtype(jnp.bfloat16)

    if g > 1:
        w_in = jnp.tile(weight, g).reshape(1, L)
        group_of_lane = jnp.arange(L) // C                                 # (L,)
        r_mat = ((group_of_lane[:, None] == jnp.arange(g)[None, :])
                 .astype(jnp.float32) * (1.0 / C)).astype(jnp.bfloat16)    # (L, g)
        b_mat = (jnp.arange(g)[:, None] == group_of_lane[None, :]
                 ).astype(jnp.bfloat16)                                    # (g, L)
        kernel = functools.partial(_ln_kernel_folded, eps=_EPS, x_is_bf16=x_is_bf16)
        extra_inputs = (r_mat, b_mat)
        extra_specs = [pl.BlockSpec((L, g), lambda i: (0, 0)),
                       pl.BlockSpec((g, L), lambda i: (0, 0))]
    else:
        w_in = weight.reshape(1, C)
        kernel = functools.partial(_ln_kernel_plain, eps=_EPS, inv_c=1.0 / C)
        extra_inputs = ()
        extra_specs = []

    x_bytes = fr * L * itemsize

    if x_bytes <= small_bytes:
        # Small-input path: one resident block, no row padding beyond g, no cost
        # estimate.  block_shape == full array dims, so (8,128) divisibility does
        # not apply even for ragged fr.
        out = pl.pallas_call(
            kernel,
            out_shape=jax.ShapeDtypeStruct((fr, L), x.dtype),
            grid_spec=pltpu.PrefetchScalarGridSpec(
                num_scalar_prefetch=0,
                grid=(1,),
                in_specs=[pl.BlockSpec((fr, L), lambda i: (0, 0)),
                          pl.BlockSpec((1, L), lambda i: (0, 0))] + extra_specs,
                out_specs=pl.BlockSpec((fr, L), lambda i: (0, 0)),
            ),
        )(x_folded, w_in, *extra_inputs)
    else:
        # Large path: ~2 MiB x blocks (multiple of 8 rows), at least 2 (even) grid
        # blocks so both v7x TensorCores get work; the last block may be ragged
        # (OOB reads are garbage rows whose writes Pallas clips).
        budget_rows = max(8, (block_bytes // (L * itemsize)) // 8 * 8)
        tr = min(budget_rows, _round_up(fr, 8))
        n_blocks = pl.cdiv(fr, tr)
        if n_blocks == 1:
            n_blocks = 2
        elif n_blocks % 2:
            n_blocks += 1
        tr = _round_up(pl.cdiv(fr, n_blocks), 8)
        n_blocks = pl.cdiv(fr, tr)

        if g > 1:
            mxu_flops = (2 * fr * L * g * (3 if x_is_bf16 else 4)
                         + 2 * 2 * fr * g * L)
            trans = fr * g
        else:
            mxu_flops = 0
            trans = fr
        cost = pl.CostEstimate(
            flops=int(10 * fr * L + mxu_flops),
            transcendentals=int(trans),
            bytes_accessed=int(2 * fr * L * itemsize),
        )

        out = pl.pallas_call(
            kernel,
            out_shape=jax.ShapeDtypeStruct((fr, L), x.dtype),
            grid_spec=pltpu.PrefetchScalarGridSpec(
                num_scalar_prefetch=0,
                grid=(n_blocks,),
                in_specs=[pl.BlockSpec((tr, L), lambda i: (i, 0)),
                          pl.BlockSpec((1, L), lambda i: (0, 0))] + extra_specs,
                out_specs=pl.BlockSpec((tr, L), lambda i: (i, 0)),
            ),
            compiler_params=pltpu.CompilerParams(
                dimension_semantics=("parallel",),
            ),
            cost_estimate=cost,
        )(x_folded, w_in, *extra_inputs)

    out = out.reshape(rows_g, C)
    if pad_rows:
        out = out[:rows]
    return out.reshape(orig_shape)


def _reference(x, weight):
    xf = x.astype(jnp.float32)
    var = jnp.var(xf, axis=-1, keepdims=True)          # biased, like unbiased=False
    return (xf / jnp.sqrt(var + 1e-5) * weight.astype(jnp.float32)).astype(x.dtype)


if __name__ == "__main__":
    key = jax.random.PRNGKey(0)
    k1, k2, k3, k4 = jax.random.split(key, 4)

    # Mirrors the parent model's usage: NCHW feature map (B=2, C=32, H=W=8)
    # reshaped to (B, H*W, C) so that channels are the normalized last dim.
    B, C, H, W = 2, 32, 8, 8
    x_nchw = jax.random.normal(k1, (B, C, H, W), dtype=jnp.float32)
    x = jnp.transpose(x_nchw, (0, 2, 3, 1)).reshape(B, H * W, C)   # (2, 64, 32)
    weight = jnp.ones((C,), dtype=jnp.float32)                     # torch.ones init

    out = jax.block_until_ready(biasfree_layernorm(x, weight))
    ref = _reference(x, weight)
    assert out.shape == x.shape and out.dtype == x.dtype
    assert jnp.allclose(out, ref, atol=1e-4, rtol=1e-4)

    # Awkward row count (rows % g != 0 -> tiny pad) with a non-trivial weight.
    x2 = jax.random.normal(k2, (2, 13, 32), dtype=jnp.float32)
    w2 = jax.random.normal(k3, (32,), dtype=jnp.float32)
    out2 = jax.block_until_ready(biasfree_layernorm(x2, w2))
    assert jnp.allclose(out2, _reference(x2, w2), atol=1e-4, rtol=1e-4)

    # C = 128 exercises the already-lane-dense (plain) path.
    x3 = jax.random.normal(k2, (4, 8, 128), dtype=jnp.float32)
    w3 = jnp.ones((128,), dtype=jnp.float32)
    out3 = jax.block_until_ready(biasfree_layernorm(x3, w3))
    assert jnp.allclose(out3, _reference(x3, w3), atol=1e-4, rtol=1e-4)

    # bf16 input exercises the hi-only fast path for sum(x).
    xb = jax.random.normal(k4, (2, 64, 32), dtype=jnp.float32).astype(jnp.bfloat16)
    outb = jax.block_until_ready(biasfree_layernorm(xb, weight))
    refb = _reference(xb, weight)
    assert outb.dtype == jnp.bfloat16
    assert jnp.allclose(outb.astype(jnp.float32), refb.astype(jnp.float32),
                        atol=2e-2, rtol=2e-2)

    # Medium input exercises the multi-block streaming path with a ragged last
    # block (no whole-array padding, no output slice).
    x5 = jax.random.normal(k4, (8, 1100, 32), dtype=jnp.float32)
    w5 = jax.random.normal(k3, (32,), dtype=jnp.float32)
    out5 = jax.block_until_ready(biasfree_layernorm(x5, w5))
    assert jnp.allclose(out5, _reference(x5, w5), atol=1e-4, rtol=1e-4)

    print("KERNEL_OK")
</pallas_src>

<mosaic_0001>
module attributes {stable_mosaic.version = 11 : i64} {
  func.func @_ln_kernel_folded(%arg0: i32, %arg1: memref<32x128xf32, #tpu.memory_space<vmem>>, %arg2: memref<1x128xf32, #tpu.memory_space<vmem>>, %arg3: memref<128x4xbf16, #tpu.memory_space<vmem>>, %arg4: memref<4x128xbf16, #tpu.memory_space<vmem>>, %arg5: memref<32x128xf32, #tpu.memory_space<vmem>>) attributes {dimension_semantics = [#tpu.dimension_semantics<arbitrary>], iteration_bounds = array<i64: 1>, scalar_prefetch = 0 : i64, scratch_operands = 0 : i64, tpu.core_type = #tpu.core_type<tc>, window_params = [{pipeline_mode = #tpu.pipeline_mode<synchronous>, transform_indices = @transform_0, window_bounds = array<i64: 32, 128>}, {pipeline_mode = #tpu.pipeline_mode<synchronous>, transform_indices = @transform_1, window_bounds = array<i64: 1, 128>}, {pipeline_mode = #tpu.pipeline_mode<synchronous>, transform_indices = @transform_2, window_bounds = array<i64: 128, 4>}, {pipeline_mode = #tpu.pipeline_mode<synchronous>, transform_indices = @transform_3, window_bounds = array<i64: 4, 128>}, {pipeline_mode = #tpu.pipeline_mode<synchronous>, transform_indices = @transform_4, window_bounds = array<i64: 32, 128>}]} {
    %c0 = arith.constant 0 : index
    %c0_0 = arith.constant 0 : index
    %0 = vector.load %arg1[%c0, %c0_0] : memref<32x128xf32, #tpu.memory_space<vmem>>, vector<32x128xf32>
    %c0_1 = arith.constant 0 : index
    %c0_2 = arith.constant 0 : index
    %1 = vector.load %arg3[%c0_1, %c0_2] : memref<128x4xbf16, #tpu.memory_space<vmem>>, vector<128x4xbf16>
    %c0_3 = arith.constant 0 : index
    %c0_4 = arith.constant 0 : index
    %2 = vector.load %arg4[%c0_3, %c0_4] : memref<4x128xbf16, #tpu.memory_space<vmem>>, vector<4x128xbf16>
    %3 = arith.truncf %0 : vector<32x128xf32> to vector<32x128xbf16>
    %4 = arith.extf %3 : vector<32x128xbf16> to vector<32x128xf32>
    %5 = arith.subf %0, %4 : vector<32x128xf32>
    %6 = arith.truncf %5 : vector<32x128xf32> to vector<32x128xbf16>
    %cst = arith.constant dense<0.000000e+00> : vector<32x4xf32>
    %7 = tpu.matmul %3, %1, %cst {dimension_numbers = #tpu.dot_dimension_numbers<[1], [0], [0], [1], [0, 0, 1, 1], [], []>} : vector<32x128xbf16>, vector<128x4xbf16>, vector<32x4xf32> -> vector<32x4xf32>
    %cst_5 = arith.constant dense<0.000000e+00> : vector<32x4xf32>
    %8 = tpu.matmul %6, %1, %cst_5 {dimension_numbers = #tpu.dot_dimension_numbers<[1], [0], [0], [1], [0, 0, 1, 1], [], []>} : vector<32x128xbf16>, vector<128x4xbf16>, vector<32x4xf32> -> vector<32x4xf32>
    %9 = arith.addf %7, %8 : vector<32x4xf32>
    %10 = arith.mulf %0, %0 : vector<32x128xf32>
    %11 = arith.truncf %10 : vector<32x128xf32> to vector<32x128xbf16>
    %12 = arith.extf %11 : vector<32x128xbf16> to vector<32x128xf32>
    %13 = arith.subf %10, %12 : vector<32x128xf32>
    %14 = arith.truncf %13 : vector<32x128xf32> to vector<32x128xbf16>
    %cst_6 = arith.constant dense<0.000000e+00> : vector<32x4xf32>
    %15 = tpu.matmul %11, %1, %cst_6 {dimension_numbers = #tpu.dot_dimension_numbers<[1], [0], [0], [1], [0, 0, 1, 1], [], []>} : vector<32x128xbf16>, vector<128x4xbf16>, vector<32x4xf32> -> vector<32x4xf32>
    %cst_7 = arith.constant dense<0.000000e+00> : vector<32x4xf32>
    %16 = tpu.matmul %14, %1, %cst_7 {dimension_numbers = #tpu.dot_dimension_numbers<[1], [0], [0], [1], [0, 0, 1, 1], [], []>} : vector<32x128xbf16>, vector<128x4xbf16>, vector<32x4xf32> -> vector<32x4xf32>
    %17 = arith.addf %15, %16 : vector<32x4xf32>
    %18 = arith.mulf %9, %9 : vector<32x4xf32>
    %19 = arith.subf %17, %18 : vector<32x4xf32>
    %cst_8 = arith.constant 0.000000e+00 : f32
    %20 = vector.broadcast %cst_8 : f32 to vector<32x4xf32>
    %21 = arith.maximumf %19, %20 : vector<32x4xf32>
    %cst_9 = arith.constant 9.99999974E-6 : f32
    %22 = vector.broadcast %cst_9 : f32 to vector<32x4xf32>
    %23 = arith.addf %21, %22 : vector<32x4xf32>
    %24 = math.rsqrt %23 : vector<32x4xf32>
    %25 = arith.truncf %24 : vector<32x4xf32> to vector<32x4xbf16>
    %26 = arith.extf %25 : vector<32x4xbf16> to vector<32x4xf32>
    %27 = arith.subf %24, %26 : vector<32x4xf32>
    %28 = arith.truncf %27 : vector<32x4xf32> to vector<32x4xbf16>
    %cst_10 = arith.constant dense<0.000000e+00> : vector<32x128xf32>
    %29 = tpu.matmul %25, %2, %cst_10 {dimension_numbers = #tpu.dot_dimension_numbers<[1], [0], [0], [1], [0, 0, 1, 1], [], []>} : vector<32x4xbf16>, vector<4x128xbf16>, vector<32x128xf32> -> vector<32x128xf32>
    %cst_11 = arith.constant dense<0.000000e+00> : vector<32x128xf32>
    %30 = tpu.matmul %28, %2, %cst_11 {dimension_numbers = #tpu.dot_dimension_numbers<[1], [0], [0], [1], [0, 0, 1, 1], [], []>} : vector<32x4xbf16>, vector<4x128xbf16>, vector<32x128xf32> -> vector<32x128xf32>
    %31 = arith.addf %29, %30 : vector<32x128xf32>
    %c0_12 = arith.constant 0 : index
    %c0_13 = arith.constant 0 : index
    %32 = vector.load %arg2[%c0_12, %c0_13] : memref<1x128xf32, #tpu.memory_space<vmem>>, vector<1x128xf32>
    %33 = arith.mulf %0, %31 : vector<32x128xf32>
    %34 = vector.broadcast %32 : vector<1x128xf32> to vector<32x128xf32>
    %35 = arith.mulf %33, %34 : vector<32x128xf32>
    %c0_14 = arith.constant 0 : index
    %c0_15 = arith.constant 0 : index
    %36 = vector.load %arg5[%c0_14, %c0_15] : memref<32x128xf32, #tpu.memory_space<vmem>>, vector<32x128xf32>
    tpu.vector_store %arg5[%c0_14, %c0_15], %35 {strides = array<i32>} : memref<32x128xf32, #tpu.memory_space<vmem>>, vector<32x128xf32>,
    return
  }
  func.func @transform_0(%arg0: i32) -> (i32, i32) {
    %c0_i32 = arith.constant 0 : i32
    %c0_i32_0 = arith.constant 0 : i32
    %c0_i32_1 = arith.constant 0 : i32
    return %c0_i32, %c0_i32_0 : i32, i32
  }
  func.func @transform_1(%arg0: i32) -> (i32, i32) {
    %c0_i32 = arith.constant 0 : i32
    %c0_i32_0 = arith.constant 0 : i32
    %c0_i32_1 = arith.constant 0 : i32
    return %c0_i32, %c0_i32_0 : i32, i32
  }
  func.func @transform_2(%arg0: i32) -> (i32, i32) {
    %c0_i32 = arith.constant 0 : i32
    %c0_i32_0 = arith.constant 0 : i32
    %c0_i32_1 = arith.constant 0 : i32
    return %c0_i32, %c0_i32_0 : i32, i32
  }
  func.func @transform_3(%arg0: i32) -> (i32, i32) {
    %c0_i32 = arith.constant 0 : i32
    %c0_i32_0 = arith.constant 0 : i32
    %c0_i32_1 = arith.constant 0 : i32
    return %c0_i32, %c0_i32_0 : i32, i32
  }
  func.func @transform_4(%arg0: i32) -> (i32, i32) {
    %c0_i32 = arith.constant 0 : i32
    %c0_i32_0 = arith.constant 0 : i32
    %c0_i32_1 = arith.constant 0 : i32
    return %c0_i32, %c0_i32_0 : i32, i32
  }
}

</mosaic_0001>

<llo_original>
// kernel: tpu_custom_call.1
$region0: #{tpu_custom_call.1}
  #allocation0 [shape = 'u32[]', space=smem, size = 0x4, offset = 0x4, fixed_abs, tag = 'smem constant byte address 0x4 - core index']
  #allocation1 [shape = 'u32[144,128]{1,0:T(1,128)}', space=vmem, size = 0x12000, scoped, tag = 'internal scratch']
  %s0 = inlined_call_operand.vmem [shape: f32[32,128], index: 0, kind: input, shape index: {}]
  %s1 = inlined_call_operand.vmem [shape: f32[1,128], index: 1, kind: input, shape index: {}]
  %s2 = inlined_call_operand.vmem [shape: bf16[128,4], index: 2, kind: input, shape index: {}]
  %s3 = inlined_call_operand.vmem [shape: bf16[4,128], index: 3, kind: input, shape index: {}]
  %s4 = inlined_call_operand.hbm [shape: f32[32,128], index: 4, kind: output, shape index: {}]
  %s5 = sld [smem:[#allocation0]]
  $region26: #{tpu_custom_call.1} parent=0
    _
  %s7 = ssub.s32 1, %s5
  %s8 = scalar_select 0, %s7, %s5
  $region1: #{tpu_custom_call.1} parent=0
    #allocation2 [shape = 'u8[16384]{0}', space=vmem, size = 0x4000, scoped, tag = 'output window, operand 0, single buffered']
    #allocation3 [shape = 's32[1]{0}', space=sflag, size = 0x4, scoped, tag = 'scoped memory for tpu_custom_call.1']
    %9 = vsyncpa [#allocation3], 0
    // Predicated region
    $region2: #{tpu_custom_call.1} parent=1 // pred_check
      _
    $region3: #{tpu_custom_call.1} parent=1 // pred_check_branch
      %11 = sbr.rel (0) target = $region5
    $region4: #{tpu_custom_call.1} parent=1 // pred_region
      _
    $region5: #{tpu_custom_call.1} parent=1 // pred_fallthru
      _
    // Predicated region
    $region6: #{tpu_custom_call.1} parent=1 // pred_check
      _
    $region7: #{tpu_custom_call.1} parent=1 // pred_check_branch
      %13 = sbr.rel (0) target = $region9
    $region8: #{tpu_custom_call.1} parent=1 // pred_region
      _
    $region9: #{tpu_custom_call.1} parent=1 // pred_fallthru
      _
    // Predicated region
    $region10: #{tpu_custom_call.1} parent=1 // pred_check
      _
    $region11: #{tpu_custom_call.1} parent=1 // pred_check_branch
      %15 = sbr.rel (0) target = $region13
    $region12: #{tpu_custom_call.1} parent=1 // pred_region
      _
    $region13: #{tpu_custom_call.1} parent=1 // pred_fallthru
      _
    // Predicated region
    $region14: #{tpu_custom_call.1} parent=1 // pred_check
      _
    $region15: #{tpu_custom_call.1} parent=1 // pred_check_branch
      %17 = sbr.rel (0) target = $region17
    $region16: #{tpu_custom_call.1} parent=1 // pred_region
      _
    $region17: #{tpu_custom_call.1} parent=1 // pred_fallthru
      _
    %v19 = vld [vmem:[%s0] sm:$0xff]
    %v20 = vld [vmem:[%s0 + $0x8] sm:$0xff]
    %v21 = vld [vmem:[%s0 + $0x10] sm:$0xff]
    %v22 = vld [vmem:[%s0 + $0x18] sm:$0xff]
    %v23 = vld [vmem:[%s2] sm:$0xf]
    %v24 = vld [vmem:[%s2 + $0x4] sm:$0xf]
    %v25 = vld [vmem:[%s2 + $0x8] sm:$0xf]
    %v26 = vld [vmem:[%s2 + $0xc] sm:$0xf]
    %v27 = vld [vmem:[%s2 + $0x10] sm:$0xf]
    %v28 = vld [vmem:[%s2 + $0x14] sm:$0xf]
    %v29 = vld [vmem:[%s2 + $0x18] sm:$0xf]
    %v30 = vld [vmem:[%s2 + $0x1c] sm:$0xf]
    %v31 = vld [vmem:[%s2 + $0x20] sm:$0xf]
    %v32 = vld [vmem:[%s2 + $0x24] sm:$0xf]
    %v33 = vld [vmem:[%s2 + $0x28] sm:$0xf]
    %v34 = vld [vmem:[%s2 + $0x2c] sm:$0xf]
    %v35 = vld [vmem:[%s2 + $0x30] sm:$0xf]
    %v36 = vld [vmem:[%s2 + $0x34] sm:$0xf]
    %v37 = vld [vmem:[%s2 + $0x38] sm:$0xf]
    %v38 = vld [vmem:[%s2 + $0x3c] sm:$0xf]
    %v39 = vld [vmem:[%s3] sm:$0x3]
    %v40 = vpack.c.bf16 %v20, %v19
    %v41 = vpack.c.bf16 %v22, %v21
    %v42 = vunpack.c.l.bf16 %v40
    %v43 = vunpack.c.h.bf16 %v40
    %v44 = vunpack.c.l.bf16 %v41
    %v45 = vunpack.c.h.bf16 %v41
    %v46 = vsub.f32 %v19, %v42
    %v47 = vsub.f32 %v20, %v43
    %v48 = vsub.f32 %v21, %v44
    %v49 = vsub.f32 %v22, %v45
    %v50 = vpack.c.bf16 %v47, %v46
    %v51 = vpack.c.bf16 %v49, %v48
    %v68 = vunpack.c.l.b16 %v23
    %v69 = vunpack.c.l.b16 %v24
    %v70 = vunpack.c.l.b16 %v25
    %v71 = vunpack.c.l.b16 %v26
    %v72 = vunpack.c.l.b16 %v27
    %v73 = vunpack.c.l.b16 %v28
    %v74 = vunpack.c.l.b16 %v29
    %v75 = vunpack.c.l.b16 %v30
    %v76 = vunpack.c.l.b16 %v31
    %v77 = vunpack.c.l.b16 %v32
    %v78 = vunpack.c.l.b16 %v33
    %v79 = vunpack.c.l.b16 %v34
    %v80 = vunpack.c.l.b16 %v35
    %v81 = vunpack.c.l.b16 %v36
    %v82 = vunpack.c.l.b16 %v37
    %v83 = vunpack.c.l.b16 %v38
    %v84 = vpack.c.b16 %v69, %v68
    %v85 = vpack.c.b16 %v71, %v70
    %v86 = vpack.c.b16 %v73, %v72
    %v87 = vpack.c.b16 %v75, %v74
    %v88 = vpack.c.b16 %v77, %v76
    %v89 = vpack.c.b16 %v79, %v78
    %v90 = vpack.c.b16 %v81, %v80
    %v91 = vpack.c.b16 %v83, %v82
    %100 = vmatprep.subr.bf16.mxu0 0
    %101 = vmatpush1.bf16.msra.mxu0 %v84
    %102 = vmatprep.subr.bf16.mxu0 0
    %103 = vmatpush1.bf16.msra.mxu0 %v85
    %104 = vmatprep.subr.bf16.mxu0 0
    %105 = vmatpush1.bf16.msra.mxu0 %v86
    %106 = vmatprep.subr.bf16.mxu0 0
    %107 = vmatpush1.bf16.msra.mxu0 %v87
    %108 = vmatprep.subr.bf16.mxu0 0
    %109 = vmatpush1.bf16.msra.mxu0 %v88
    %110 = vmatprep.subr.bf16.mxu0 0
    %111 = vmatpush1.bf16.msra.mxu0 %v89
    %112 = vmatprep.subr.bf16.mxu0 0
    %113 = vmatpush1.bf16.msra.mxu0 %v90
    %114 = vmatprep.subr.bf16.mxu0 0
    %115 = vmatpush1.bf16.msra.mxu0 %v91
    %116 = vmatprep.subr.bf16.mxu0 0
    %117 = vmatpush1.bf16.msra.mxu0 0
    %118 = vmatprep.subr.bf16.mxu0 0
    %119 = vmatpush1.bf16.msra.mxu0 0
    %120 = vmatprep.subr.bf16.mxu0 0
    %121 = vmatpush1.bf16.msra.mxu0 0
    %122 = vmatprep.subr.bf16.mxu0 0
    %123 = vmatpush1.bf16.msra.mxu0 0
    %124 = vmatprep.subr.bf16.mxu0 0
    %125 = vmatpush1.bf16.msra.mxu0 0
    %126 = vmatprep.subr.bf16.mxu0 0
    %127 = vmatpush1.bf16.msra.mxu0 0
    %128 = vmatprep.subr.bf16.mxu0 0
    %129 = vmatpush1.bf16.msra.mxu0 0
    %130 = vmatprep.subr.bf16.mxu0 0
    %131 = vmatpush1.bf16.msra.mxu0 0
    %132 = vmatprep.mubr.bf16.mxu0 0
    %133 = vmatmul.mubr.bf16.gmra.mrb[0].mxu0 %v50
    %v134 = vpop.f32.mrb[0].mxu0
    %v135 = vadd.f32 0.0, %v134
    %v136 = vpop.f32.mrb[0].mxu0
    %v137 = vpop.f32.mrb[0].mxu0
    %v138 = vadd.f32 0.0, %v137
    %v139 = vpop.f32.mrb[0].mxu0
    %140 = vmatprep.mubr.bf16.mxu0 0
    %141 = vmatmul.mubr.bf16.gmra.mrb[0].mxu0 %v51
    %v142 = vpop.f32.mrb[0].mxu0
    %v143 = vadd.f32 0.0, %v142
    %v144 = vpop.f32.mrb[0].mxu0
    %v145 = vpop.f32.mrb[0].mxu0
    %v146 = vadd.f32 0.0, %v145
    %v147 = vpop.f32.mrb[0].mxu0
    %148 = vdwg.mxu0
    %149 = vmatprep.subr.bf16.mxu0 0
    %150 = vmatpush1.bf16.msra.mxu0 %v84
    %151 = vmatprep.subr.bf16.mxu0 0
    %152 = vmatpush1.bf16.msra.mxu0 %v85
    %153 = vmatprep.subr.bf16.mxu0 0
    %154 = vmatpush1.bf16.msra.mxu0 %v86
    %155 = vmatprep.subr.bf16.mxu0 0
    %156 = vmatpush1.bf16.msra.mxu0 %v87
    %157 = vmatprep.subr.bf16.mxu0 0
    %158 = vmatpush1.bf16.msra.mxu0 %v88
    %159 = vmatprep.subr.bf16.mxu0 0
    %160 = vmatpush1.bf16.msra.mxu0 %v89
    %161 = vmatprep.subr.bf16.mxu0 0
    %162 = vmatpush1.bf16.msra.mxu0 %v90
    %163 = vmatprep.subr.bf16.mxu0 0
    %164 = vmatpush1.bf16.msra.mxu0 %v91
    %165 = vmatprep.subr.bf16.mxu0 0
    %166 = vmatpush1.bf16.msra.mxu0 0
    %167 = vmatprep.subr.bf16.mxu0 0
    %168 = vmatpush1.bf16.msra.mxu0 0
    %169 = vmatprep.subr.bf16.mxu0 0
    %170 = vmatpush1.bf16.msra.mxu0 0
    %171 = vmatprep.subr.bf16.mxu0 0
    %172 = vmatpush1.bf16.msra.mxu0 0
    %173 = vmatprep.subr.bf16.mxu0 0
    %174 = vmatpush1.bf16.msra.mxu0 0
    %175 = vmatprep.subr.bf16.mxu0 0
    %176 = vmatpush1.bf16.msra.mxu0 0
    %177 = vmatprep.subr.bf16.mxu0 0
    %178 = vmatpush1.bf16.msra.mxu0 0
    %179 = vmatprep.subr.bf16.mxu0 0
    %180 = vmatpush1.bf16.msra.mxu0 0
    %181 = vmatprep.mubr.bf16.mxu0 0
    %182 = vmatmul.mubr.bf16.gmra.mrb[0].mxu0 %v40
    %v183 = vpop.f32.mrb[0].mxu0
    %v184 = vadd.f32 %v135, %v183
    %v185 = vpop.f32.mrb[0].mxu0
    %v186 = vpop.f32.mrb[0].mxu0
    %v187 = vadd.f32 %v138, %v186
    %v188 = vpop.f32.mrb[0].mxu0
    %189 = vmatprep.mubr.bf16.mxu0 0
    %190 = vmatmul.mubr.bf16.gmra.mrb[0].mxu0 %v41
    %v191 = vpop.f32.mrb[0].mxu0
    %v192 = vadd.f32 %v143, %v191
    %v193 = vpop.f32.mrb[0].mxu0
    %v194 = vpop.f32.mrb[0].mxu0
    %v195 = vadd.f32 %v146, %v194
    %v196 = vpop.f32.mrb[0].mxu0
    %197 = vdwg.mxu0
    %v198 = vmul.f32 %v19, %v19
    %v199 = vmul.f32 %v20, %v20
    %v200 = vmul.f32 %v21, %v21
    %v201 = vmul.f32 %v22, %v22
    %v202 = vpack.c.bf16 %v199, %v198
    %v203 = vpack.c.bf16 %v201, %v200
    %v204 = vunpack.c.l.bf16 %v202
    %v205 = vunpack.c.h.bf16 %v202
    %v206 = vunpack.c.l.bf16 %v203
    %v207 = vunpack.c.h.bf16 %v203
    %v208 = vsub.f32 %v198, %v204
    %v209 = vsub.f32 %v199, %v205
    %v210 = vsub.f32 %v200, %v206
    %v211 = vsub.f32 %v201, %v207
    %v212 = vpack.c.bf16 %v209, %v208
    %v213 = vpack.c.bf16 %v211, %v210
    %214 = vmatprep.subr.bf16.mxu0 0
    %215 = vmatpush1.bf16.msra.mxu0 %v84
    %216 = vmatprep.subr.bf16.mxu0 0
    %217 = vmatpush1.bf16.msra.mxu0 %v85
    %218 = vmatprep.subr.bf16.mxu0 0
    %219 = vmatpush1.bf16.msra.mxu0 %v86
    %220 = vmatprep.subr.bf16.mxu0 0
    %221 = vmatpush1.bf16.msra.mxu0 %v87
    %222 = vmatprep.subr.bf16.mxu0 0
    %223 = vmatpush1.bf16.msra.mxu0 %v88
    %224 = vmatprep.subr.bf16.mxu0 0
    %225 = vmatpush1.bf16.msra.mxu0 %v89
    %226 = vmatprep.subr.bf16.mxu0 0
    %227 = vmatpush1.bf16.msra.mxu0 %v90
    %228 = vmatprep.subr.bf16.mxu0 0
    %229 = vmatpush1.bf16.msra.mxu0 %v91
    %230 = vmatprep.subr.bf16.mxu0 0
    %231 = vmatpush1.bf16.msra.mxu0 0
    %232 = vmatprep.subr.bf16.mxu0 0
    %233 = vmatpush1.bf16.msra.mxu0 0
    %234 = vmatprep.subr.bf16.mxu0 0
    %235 = vmatpush1.bf16.msra.mxu0 0
    %236 = vmatprep.subr.bf16.mxu0 0
    %237 = vmatpush1.bf16.msra.mxu0 0
    %238 = vmatprep.subr.bf16.mxu0 0
    %239 = vmatpush1.bf16.msra.mxu0 0
    %240 = vmatprep.subr.bf16.mxu0 0
    %241 = vmatpush1.bf16.msra.mxu0 0
    %242 = vmatprep.subr.bf16.mxu0 0
    %243 = vmatpush1.bf16.msra.mxu0 0
    %244 = vmatprep.subr.bf16.mxu0 0
    %245 = vmatpush1.bf16.msra.mxu0 0
    %246 = vmatprep.mubr.bf16.mxu0 0
    %247 = vmatmul.mubr.bf16.gmra.mrb[0].mxu0 %v212
    %v248 = vpop.f32.mrb[0].mxu0
    %v249 = vadd.f32 0.0, %v248
    %v250 = vpop.f32.mrb[0].mxu0
    %v251 = vpop.f32.mrb[0].mxu0
    %v252 = vadd.f32 0.0, %v251
    %v253 = vpop.f32.mrb[0].mxu0
    %254 = vmatprep.mubr.bf16.mxu0 0
    %255 = vmatmul.mubr.bf16.gmra.mrb[0].mxu0 %v213
    %v256 = vpop.f32.mrb[0].mxu0
    %v257 = vadd.f32 0.0, %v256
    %v258 = vpop.f32.mrb[0].mxu0
    %v259 = vpop.f32.mrb[0].mxu0
    %v260 = vadd.f32 0.0, %v259
    %v261 = vpop.f32.mrb[0].mxu0
    %262 = vdwg.mxu0
    %263 = vmatprep.subr.bf16.mxu0 0
    %264 = vmatpush1.bf16.msra.mxu0 %v84
    %265 = vmatprep.subr.bf16.mxu0 0
    %266 = vmatpush1.bf16.msra.mxu0 %v85
    %267 = vmatprep.subr.bf16.mxu0 0
    %268 = vmatpush1.bf16.msra.mxu0 %v86
    %269 = vmatprep.subr.bf16.mxu0 0
    %270 = vmatpush1.bf16.msra.mxu0 %v87
    %271 = vmatprep.subr.bf16.mxu0 0
    %272 = vmatpush1.bf16.msra.mxu0 %v88
    %273 = vmatprep.subr.bf16.mxu0 0
    %274 = vmatpush1.bf16.msra.mxu0 %v89
    %275 = vmatprep.subr.bf16.mxu0 0
    %276 = vmatpush1.bf16.msra.mxu0 %v90
    %277 = vmatprep.subr.bf16.mxu0 0
    %278 = vmatpush1.bf16.msra.mxu0 %v91
    %279 = vmatprep.subr.bf16.mxu0 0
    %280 = vmatpush1.bf16.msra.mxu0 0
    %281 = vmatprep.subr.bf16.mxu0 0
    %282 = vmatpush1.bf16.msra.mxu0 0
    %283 = vmatprep.subr.bf16.mxu0 0
    %284 = vmatpush1.bf16.msra.mxu0 0
    %285 = vmatprep.subr.bf16.mxu0 0
    %286 = vmatpush1.bf16.msra.mxu0 0
    %287 = vmatprep.subr.bf16.mxu0 0
    %288 = vmatpush1.bf16.msra.mxu0 0
    %289 = vmatprep.subr.bf16.mxu0 0
    %290 = vmatpush1.bf16.msra.mxu0 0
    %291 = vmatprep.subr.bf16.mxu0 0
    %292 = vmatpush1.bf16.msra.mxu0 0
    %293 = vmatprep.subr.bf16.mxu0 0
    %294 = vmatpush1.bf16.msra.mxu0 0
    %295 = vmatprep.mubr.bf16.mxu0 0
    %296 = vmatmul.mubr.bf16.gmra.mrb[0].mxu0 %v202
    %v297 = vpop.f32.mrb[0].mxu0
    %v298 = vadd.f32 %v249, %v297
    %v299 = vpop.f32.mrb[0].mxu0
    %v300 = vpop.f32.mrb[0].mxu0
    %v301 = vadd.f32 %v252, %v300
    %v302 = vpop.f32.mrb[0].mxu0
    %303 = vmatprep.mubr.bf16.mxu0 0
    %304 = vmatmul.mubr.bf16.gmra.mrb[0].mxu0 %v203
    %v305 = vpop.f32.mrb[0].mxu0
    %v306 = vadd.f32 %v257, %v305
    %v307 = vpop.f32.mrb[0].mxu0
    %v308 = vpop.f32.mrb[0].mxu0
    %v309 = vadd.f32 %v260, %v308
    %v310 = vpop.f32.mrb[0].mxu0
    %311 = vdwg.mxu0
    %v312 = vmul.f32 %v184, %v184
    %v313 = vmul.f32 %v187, %v187
    %v314 = vmul.f32 %v192, %v192
    %v315 = vmul.f32 %v195, %v195
    %v316 = vsub.f32 %v298, %v312
    %v317 = vsub.f32 %v301, %v313
    %v318 = vsub.f32 %v306, %v314
    %v319 = vsub.f32 %v309, %v315
    %v320 = vmax.f32 %v316, 0.0
    %v321 = vmax.f32 %v317, 0.0
    %v322 = vmax.f32 %v318, 0.0
    %v323 = vmax.f32 %v319, 0.0
    %v324 = vadd.f32 %v320, 1e-05
    %v325 = vadd.f32 %v321, 1e-05
    %v326 = vadd.f32 %v322, 1e-05
    %v327 = vadd.f32 %v323, 1e-05
    %v328 = vrsqrt.pop %v324
    %v329 = vrsqrt.pop %v325
    %v330 = vrsqrt.pop %v326
    %v331 = vrsqrt.pop %v327
    %v332 = vpack.c.bf16 %v329, %v328
    %v333 = vpack.c.bf16 %v331, %v330
    %v334 = vunpack.c.l.bf16 %v332
    %v335 = vunpack.c.h.bf16 %v332
    %v336 = vunpack.c.l.bf16 %v333
    %v337 = vunpack.c.h.bf16 %v333
    %v338 = vsub.f32 %v328, %v334
    %v339 = vsub.f32 %v329, %v335
    %v340 = vsub.f32 %v330, %v336
    %v341 = vsub.f32 %v331, %v337
    %v342 = vpack.c.bf16 %v339, %v338
    %v343 = vpack.c.bf16 %v341, %v340
    %vm344 = vcmask 31744
    %v346 = vsel %vm344, %v342, 0
    %v349 = vsel %vm344, %v343, 0
    %vm351 = vcmask 1041408
    %v353 = vsel %vm351, %v39, 0
    %355 = vmatprep.subr.bf16.mxu0 0
    %356 = vmatpush1.bf16.msra.mxu0 %v353
    %357 = vmatprep.subr.bf16.mxu0 0
    %358 = vmatpush1.bf16.msra.mxu0 0
    %359 = vmatprep.subr.bf16.mxu0 0
    %360 = vmatpush1.bf16.msra.mxu0 0
    %361 = vmatprep.subr.bf16.mxu0 0
    %362 = vmatpush1.bf16.msra.mxu0 0
    %363 = vmatprep.subr.bf16.mxu0 0
    %364 = vmatpush1.bf16.msra.mxu0 0
    %365 = vmatprep.subr.bf16.mxu0 0
    %366 = vmatpush1.bf16.msra.mxu0 0
    %367 = vmatprep.subr.bf16.mxu0 0
    %368 = vmatpush1.bf16.msra.mxu0 0
    %369 = vmatprep.subr.bf16.mxu0 0
    %370 = vmatpush1.bf16.msra.mxu0 0
    %371 = vmatprep.subr.bf16.mxu0 0
    %372 = vmatpush1.bf16.msra.mxu0 0
    %373 = vmatprep.subr.bf16.mxu0 0
    %374 = vmatpush1.bf16.msra.mxu0 0
    %375 = vmatprep.subr.bf16.mxu0 0
    %376 = vmatpush1.bf16.msra.mxu0 0
    %377 = vmatprep.subr.bf16.mxu0 0
    %378 = vmatpush1.bf16.msra.mxu0 0
    %379 = vmatprep.subr.bf16.mxu0 0
    %380 = vmatpush1.bf16.msra.mxu0 0
    %381 = vmatprep.subr.bf16.mxu0 0
    %382 = vmatpush1.bf16.msra.mxu0 0
    %383 = vmatprep.subr.bf16.mxu0 0
    %384 = vmatpush1.bf16.msra.mxu0 0
    %385 = vmatprep.subr.bf16.mxu0 0
    %386 = vmatpush1.bf16.msra.mxu0 0
    %387 = vmatprep.mubr.bf16.mxu0 0
    %388 = vmatmul.mubr.bf16.gmra.mrb[0].mxu0 %v346
    %v389 = vpop.f32.mrb[0].mxu0
    %v390 = vadd.f32 0.0, %v389
    %v391 = vpop.f32.mrb[0].mxu0
    %v392 = vpop.f32.mrb[0].mxu0
    %v393 = vadd.f32 0.0, %v392
    %v394 = vpop.f32.mrb[0].mxu0
    %395 = vmatprep.mubr.bf16.mxu0 0
    %396 = vmatmul.mubr.bf16.gmra.mrb[0].mxu0 %v349
    %v397 = vpop.f32.mrb[0].mxu0
    %v398 = vadd.f32 0.0, %v397
    %v399 = vpop.f32.mrb[0].mxu0
    %v400 = vpop.f32.mrb[0].mxu0
    %v401 = vadd.f32 0.0, %v400
    %v402 = vpop.f32.mrb[0].mxu0
    %403 = vdwg.mxu0
    %v405 = vsel %vm344, %v332, 0
    %v408 = vsel %vm344, %v333, 0
    %410 = vmatprep.subr.bf16.mxu0 0
    %411 = vmatpush1.bf16.msra.mxu0 %v353
    %412 = vmatprep.subr.bf16.mxu0 0
    %413 = vmatpush1.bf16.msra.mxu0 0
    %414 = vmatprep.subr.bf16.mxu0 0
    %415 = vmatpush1.bf16.msra.mxu0 0
    %416 = vmatprep.subr.bf16.mxu0 0
    %417 = vmatpush1.bf16.msra.mxu0 0
    %418 = vmatprep.subr.bf16.mxu0 0
    %419 = vmatpush1.bf16.msra.mxu0 0
    %420 = vmatprep.subr.bf16.mxu0 0
    %421 = vmatpush1.bf16.msra.mxu0 0
    %422 = vmatprep.subr.bf16.mxu0 0
    %423 = vmatpush1.bf16.msra.mxu0 0
    %424 = vmatprep.subr.bf16.mxu0 0
    %425 = vmatpush1.bf16.msra.mxu0 0
    %426 = vmatprep.subr.bf16.mxu0 0
    %427 = vmatpush1.bf16.msra.mxu0 0
    %428 = vmatprep.subr.bf16.mxu0 0
    %429 = vmatpush1.bf16.msra.mxu0 0
    %430 = vmatprep.subr.bf16.mxu0 0
    %431 = vmatpush1.bf16.msra.mxu0 0
    %432 = vmatprep.subr.bf16.mxu0 0
    %433 = vmatpush1.bf16.msra.mxu0 0
    %434 = vmatprep.subr.bf16.mxu0 0
    %435 = vmatpush1.bf16.msra.mxu0 0
    %436 = vmatprep.subr.bf16.mxu0 0
    %437 = vmatpush1.bf16.msra.mxu0 0
    %438 = vmatprep.subr.bf16.mxu0 0
    %439 = vmatpush1.bf16.msra.mxu0 0
    %440 = vmatprep.subr.bf16.mxu0 0
    %441 = vmatpush1.bf16.msra.mxu0 0
    %442 = vmatprep.mubr.bf16.mxu0 0
    %443 = vmatmul.mubr.bf16.gmra.mrb[0].mxu0 %v405
    %v444 = vpop.f32.mrb[0].mxu0
    %v445 = vadd.f32 %v390, %v444
    %v446 = vpop.f32.mrb[0].mxu0
    %v447 = vpop.f32.mrb[0].mxu0
    %v448 = vadd.f32 %v393, %v447
    %v449 = vpop.f32.mrb[0].mxu0
    %450 = vmatprep.mubr.bf16.mxu0 0
    %451 = vmatmul.mubr.bf16.gmra.mrb[0].mxu0 %v408
    %v452 = vpop.f32.mrb[0].mxu0
    %v453 = vadd.f32 %v398, %v452
    %v454 = vpop.f32.mrb[0].mxu0
    %v455 = vpop.f32.mrb[0].mxu0
    %v456 = vadd.f32 %v401, %v455
    %v457 = vpop.f32.mrb[0].mxu0
    %458 = vdwg.mxu0
    %v459 = vld [vmem:[%s1] sm:$0x1]
    %v460 = vmul.f32 %v19, %v445
    %v461 = vmul.f32 %v20, %v448
    %v462 = vmul.f32 %v21, %v453
    %v463 = vmul.f32 %v22, %v456
    %v465 = vlaneseq
    %v466 = vshrl.u32 %v465, 7
    %v467 = vsub.s32 0, %v466
    %v468 = vrot.slane %v459, %v467
    %v470 = vmul.f32 %v460, %v468
    %v471 = vmul.f32 %v461, %v468
    %v472 = vmul.f32 %v462, %v468
    %v473 = vmul.f32 %v463, %v468
    %474 = vst [vmem:[#allocation2] sm:$0xff] %v470
    %475 = vst [vmem:[#allocation2 + $0x8] sm:$0xff] %v471
    %476 = vst [vmem:[#allocation2 + $0x10] sm:$0xff] %v472
    %477 = vst [vmem:[#allocation2 + $0x18] sm:$0xff] %v473
    // Predicated region
    $region18: #{tpu_custom_call.1} parent=1 // pred_check
      _
    $region19: #{tpu_custom_call.1} parent=1 // pred_check_branch
      %479 = sbr.rel (0) target = $region21
    $region20: #{tpu_custom_call.1} parent=1 // pred_region
      %s481 = ssub.s32 512, 512
      %482 = vsyncadd [#allocation3], %s481
      %s483 = sshll.u32 [#allocation2], 4
      %s484 = int_to_ptr.vmem [resolvable:$true] %s483
      %489 = dma.vmem_to_hbm [thread:$0]  %s484, 512, %s4, [#allocation3], 128, 128, 8
    $region21: #{tpu_custom_call.1} parent=1 // pred_fallthru
      _
    // Predicated region
    $region22: #{tpu_custom_call.1} parent=1 // pred_check
      _
    $region23: #{tpu_custom_call.1} parent=1 // pred_check_branch
      %491 = sbr.rel (0) target = $region25
    $region24: #{tpu_custom_call.1} parent=1 // pred_region
      %492 = dma.done [#allocation3], 512
    $region25: #{tpu_custom_call.1} parent=1 // pred_fallthru
      _
    %493 = vsyncpa [#allocation3], 1

</llo_original>
